<compile_context>
chip_gen: v6e
topology: v6e:2x2x1
jax: 0.10.0
libtpu: 0.0.40
codegen_flags: <defaults>
</compile_context>

<pallas_src>
import functools

import jax
import jax.numpy as jnp
from jax.experimental import pallas as pl
from jax.experimental.pallas import tpu as pltpu


# --------------------------------------------------------------------------- in-kernel math
def _fast_recip(x):
    """1/x via EUP approx reciprocal + one Newton step (relative error ~eps^2 << 1e-6)."""
    r = pl.reciprocal(x, approx=True)
    return r * (2.0 - x * r)


def _std_normal_cdf(x):
    """Phi(x) = 0.5*(1 + erf(x/sqrt(2))), erf via Abramowitz-Stegun 7.1.26 (|err| < 1.5e-7)."""
    y = x * 0.7071067811865476
    sign = jnp.where(y < 0.0, -1.0, 1.0)
    a = jnp.abs(y)
    t = _fast_recip(1.0 + 0.3275911 * a)            # approx recip off the single EUP slot
    poly = t * (0.254829592
                + t * (-0.284496736
                       + t * (1.421413741
                              + t * (-1.453152027 + t * 1.061405429))))
    erf_a = 1.0 - poly * jnp.exp(-a * a)
    return 0.5 * (1.0 + sign * erf_a)


# --------------------------------------------------------------------------- kernel
def cvae_kernel(c_ref, w_ref, out_ref):
    """c_ref: (B, C); w_ref: (CP+104, 20) packed params; out_ref: (B, T)."""
    B, C = c_ref.shape
    T = out_ref.shape[1]
    CP = ((C + 7) // 8) * 8                         # sublane-aligned rows of the w1a block
    o1b, od1, od2, od3, ob = CP, CP + 24, CP + 48, CP + 72, CP + 96

    def lin(x, row, n_in):
        # All weight blocks are zero-padded to 20 lanes; padded output lanes stay exactly 0.
        return jnp.dot(x, w_ref[row:row + n_in, :], preferred_element_type=jnp.float32)

    c = c_ref[...]

    # linear1: C -> 20 -> 10 (logical widths; physical width 20 with exact-zero padding)
    h = jnp.maximum(lin(c, 0, C) + w_ref[ob:ob + 1, :], 0.0)
    z = lin(h, o1b, 20) + w_ref[ob + 1:ob + 2, :]                  # cols 10:20 == 0

    # Shared decoder head (linear2 == linear3 == linear4 share parameters in the original
    # module), evaluated ONCE: eta = mu = sigma = v.
    h = jnp.maximum(lin(z, od1, 20) + w_ref[ob + 2:ob + 3, :], 0.0)
    h = jnp.maximum(lin(h, od2, 20) + w_ref[ob + 3:ob + 4, :], 0.0)   # cols 8:20 == 0
    v = (lin(h, od3, 20) + w_ref[ob + 4:ob + 5, :])[:, 0:1]          # (B, 1)

    # dashun_model for ALL t at once: one (B, T) elementwise slab, one store.
    log_t = jnp.log(
        jax.lax.broadcasted_iota(jnp.int32, (1, T), 1).astype(jnp.float32) + 1.0)
    inv_s = _fast_recip(1.0 + v)                   # per-row reciprocal, kept off the slab
    x = (log_t - v) * inv_s                        # (B, T)
    out_ref[...] = jnp.exp(v * _std_normal_cdf(x)) - 1.0


# --------------------------------------------------------------------------- wrapper
@functools.partial(jax.jit, static_argnames=("pred_year", "batch_tile"))
def cvae_forward(c, wslab, pred_year, batch_tile=2048):
    """c: (B, hidden_channels); wslab: packed params. Returns (B, pred_year)."""
    B, C = c.shape
    CP = ((C + 7) // 8) * 8
    assert wslab.shape == (CP + 104, 20), wslab.shape
    c = c.astype(jnp.float32)
    T = int(pred_year)

    if B <= batch_tile:
        # Tiny / moderate batch: single block, fully VMEM-resident, zero wrapper pad/slice ops.
        vmem = pl.BlockSpec(memory_space=pltpu.MemorySpace.VMEM)
        return pl.pallas_call(
            cvae_kernel,
            out_shape=jax.ShapeDtypeStruct((B, T), jnp.float32),
            in_specs=[vmem, vmem],
            out_specs=vmem,
        )(c, wslab)

    # Large batch: batch-tiled grid -> double-buffered DMA/compute overlap, bounded VMEM,
    # and (on v7x) both TensorCores via the parallel dimension semantics.
    TB = batch_tile                                 # multiple of 8; ~TB*(C+T)*4*2 bytes in flight
    nb = -(-B // TB)
    Bp = nb * TB
    if Bp != B:
        c = jnp.zeros((Bp, C), jnp.float32).at[:B].set(c)
    out = pl.pallas_call(
        cvae_kernel,
        out_shape=jax.ShapeDtypeStruct((Bp, T), jnp.float32),
        grid=(nb,),
        in_specs=[pl.BlockSpec((TB, C), lambda i: (i, 0)),
                  pl.BlockSpec(wslab.shape, lambda i: (0, 0))],   # weights stay VMEM-resident
        out_specs=pl.BlockSpec((TB, T), lambda i: (i, 0)),
        compiler_params=pltpu.CompilerParams(dimension_semantics=("parallel",)),
    )(c, wslab)
    return out[:B]


# --------------------------------------------------------------------------- params & packing
def init_params(key, hidden_channels):
    H1, H2 = 20, 10          # hidden['conditional_1'], hidden['encoder_2']
    D1, D2, D3 = 20, 8, 1    # hidden['decoder_1'..'decoder_3']
    ks = jax.random.split(key, 10)

    def u(k, shape, fan_in):
        s = float(fan_in) ** -0.5
        return jax.random.uniform(k, shape, jnp.float32, -s, s)

    return {
        # linear1: hidden_channels -> 20 -> 10 (weights stored (in, out))
        "w1a": u(ks[0], (hidden_channels, H1), hidden_channels),
        "b1a": u(ks[1], (H1,), hidden_channels),
        "w1b": u(ks[2], (H1, H2), H1),
        "b1b": u(ks[3], (H2,), H1),
        # Shared decoder head 10 -> 20 -> 8 -> 1 (linear2 == linear3 == linear4)
        "wd1": u(ks[4], (H2, D1), H2),
        "bd1": u(ks[5], (D1,), H2),
        "wd2": u(ks[6], (D1, D2), D1),
        "bd2": u(ks[7], (D2,), D1),
        "wd3": u(ks[8], (D2, D3), D2),
        "bd3": u(ks[9], (D3,), D2),
    }


def pack_params(params, hidden_channels):
    """Pack every weight/bias into one (CP+104, 20) f32 slab (done ONCE, outside forward)."""
    C = hidden_channels
    CP = ((C + 7) // 8) * 8
    slab = jnp.zeros((CP + 104, 20), jnp.float32)

    def put_w(s, row, w):
        r, c = w.shape
        return s.at[row:row + r, 0:c].set(jnp.asarray(w, jnp.float32))

    def put_b(s, row, b):
        b = jnp.asarray(b, jnp.float32).reshape(-1)
        return s.at[row, 0:b.shape[0]].set(b)

    slab = put_w(slab, 0, params["w1a"])
    slab = put_w(slab, CP, params["w1b"])
    slab = put_w(slab, CP + 24, params["wd1"])
    slab = put_w(slab, CP + 48, params["wd2"])
    slab = put_w(slab, CP + 72, params["wd3"])
    slab = put_b(slab, CP + 96, params["b1a"])
    slab = put_b(slab, CP + 97, params["b1b"])
    slab = put_b(slab, CP + 98, params["bd1"])
    slab = put_b(slab, CP + 99, params["bd2"])
    slab = put_b(slab, CP + 100, params["bd3"])
    return slab


# --------------------------------------------------------------------------- pure-JAX reference
def cvae_reference(c, params, pred_year):
    z = jnp.maximum(c @ params["w1a"] + params["b1a"], 0.0) @ params["w1b"] + params["b1b"]
    h = jnp.maximum(z @ params["wd1"] + params["bd1"], 0.0)
    h = jnp.maximum(h @ params["wd2"] + params["bd2"], 0.0)
    v = h @ params["wd3"] + params["bd3"]                   # (B,1): eta == mu == sigma
    t = jnp.arange(1, pred_year + 1, dtype=jnp.float32)[None, :]
    x = (jnp.log(t) - v) / (1.0 + v)
    return jnp.exp(v * jax.scipy.stats.norm.cdf(x)) - 1.0   # (B, T)


if __name__ == "__main__":
    B = 2
    HIDDEN_CHANNELS = 32     # args.hidden_channels
    PRED_YEAR = 8            # args.node_year

    key = jax.random.PRNGKey(0)
    k_param, k_c = jax.random.split(key)
    params = init_params(k_param, HIDDEN_CHANNELS)
    wslab = pack_params(params, HIDDEN_CHANNELS)            # packed once, outside hot path
    c = jax.random.normal(k_c, (B, HIDDEN_CHANNELS), jnp.float32)

    pred = cvae_forward(c, wslab, pred_year=PRED_YEAR)
    pred = jax.block_until_ready(pred)

    ref = cvae_reference(c, params, PRED_YEAR)
    assert pred.shape == (B, PRED_YEAR), pred.shape
    max_diff = float(jnp.max(jnp.abs(pred - ref)))
    assert jnp.allclose(pred, ref, atol=1e-4, rtol=1e-4), f"max abs diff {max_diff}"
    print("KERNEL_OK")
</pallas_src>

<mosaic_0001>
module attributes {stable_mosaic.version = 11 : i64} {
  func.func @cvae_kernel(%arg0: memref<2x32xf32, #tpu.memory_space<vmem>>, %arg1: memref<136x20xf32, #tpu.memory_space<vmem>>, %arg2: memref<2x8xf32, #tpu.memory_space<vmem>>) attributes {dimension_semantics = [], scalar_prefetch = 0 : i64, scratch_operands = 0 : i64, tpu.core_type = #tpu.core_type<tc>} {
    %c0 = arith.constant 0 : index
    %c0_0 = arith.constant 0 : index
    %0 = vector.load %arg0[%c0, %c0_0] : memref<2x32xf32, #tpu.memory_space<vmem>>, vector<2x32xf32>
    %c0_1 = arith.constant 0 : index
    %c0_2 = arith.constant 0 : index
    %1 = vector.load %arg1[%c0_1, %c0_2] : memref<136x20xf32, #tpu.memory_space<vmem>>, vector<32x20xf32>
    %cst = arith.constant dense<0.000000e+00> : vector<2x20xf32>
    %2 = tpu.matmul %0, %1, %cst {dimension_numbers = #tpu.dot_dimension_numbers<[1], [0], [0], [1], [0, 0, 1, 1], [], []>} : vector<2x32xf32>, vector<32x20xf32>, vector<2x20xf32> -> vector<2x20xf32>
    %c128 = arith.constant 128 : index
    %c0_3 = arith.constant 0 : index
    %3 = vector.load %arg1[%c128, %c0_3] : memref<136x20xf32, #tpu.memory_space<vmem>>, vector<1x20xf32>
    %4 = vector.broadcast %3 : vector<1x20xf32> to vector<2x20xf32>
    %5 = arith.addf %2, %4 : vector<2x20xf32>
    %cst_4 = arith.constant 0.000000e+00 : f32
    %6 = vector.broadcast %cst_4 : f32 to vector<2x20xf32>
    %7 = arith.maximumf %5, %6 : vector<2x20xf32>
    %c32 = arith.constant 32 : index
    %c0_5 = arith.constant 0 : index
    %8 = vector.load %arg1[%c32, %c0_5] : memref<136x20xf32, #tpu.memory_space<vmem>>, vector<20x20xf32>
    %cst_6 = arith.constant dense<0.000000e+00> : vector<2x20xf32>
    %9 = tpu.matmul %7, %8, %cst_6 {dimension_numbers = #tpu.dot_dimension_numbers<[1], [0], [0], [1], [0, 0, 1, 1], [], []>} : vector<2x20xf32>, vector<20x20xf32>, vector<2x20xf32> -> vector<2x20xf32>
    %c129 = arith.constant 129 : index
    %c0_7 = arith.constant 0 : index
    %10 = vector.load %arg1[%c129, %c0_7] : memref<136x20xf32, #tpu.memory_space<vmem>>, vector<1x20xf32>
    %11 = vector.broadcast %10 : vector<1x20xf32> to vector<2x20xf32>
    %12 = arith.addf %9, %11 : vector<2x20xf32>
    %c56 = arith.constant 56 : index
    %c0_8 = arith.constant 0 : index
    %13 = vector.load %arg1[%c56, %c0_8] : memref<136x20xf32, #tpu.memory_space<vmem>>, vector<20x20xf32>
    %cst_9 = arith.constant dense<0.000000e+00> : vector<2x20xf32>
    %14 = tpu.matmul %12, %13, %cst_9 {dimension_numbers = #tpu.dot_dimension_numbers<[1], [0], [0], [1], [0, 0, 1, 1], [], []>} : vector<2x20xf32>, vector<20x20xf32>, vector<2x20xf32> -> vector<2x20xf32>
    %c130 = arith.constant 130 : index
    %c0_10 = arith.constant 0 : index
    %15 = vector.load %arg1[%c130, %c0_10] : memref<136x20xf32, #tpu.memory_space<vmem>>, vector<1x20xf32>
    %16 = vector.broadcast %15 : vector<1x20xf32> to vector<2x20xf32>
    %17 = arith.addf %14, %16 : vector<2x20xf32>
    %cst_11 = arith.constant 0.000000e+00 : f32
    %18 = vector.broadcast %cst_11 : f32 to vector<2x20xf32>
    %19 = arith.maximumf %17, %18 : vector<2x20xf32>
    %c80 = arith.constant 80 : index
    %c0_12 = arith.constant 0 : index
    %20 = vector.load %arg1[%c80, %c0_12] : memref<136x20xf32, #tpu.memory_space<vmem>>, vector<20x20xf32>
    %cst_13 = arith.constant dense<0.000000e+00> : vector<2x20xf32>
    %21 = tpu.matmul %19, %20, %cst_13 {dimension_numbers = #tpu.dot_dimension_numbers<[1], [0], [0], [1], [0, 0, 1, 1], [], []>} : vector<2x20xf32>, vector<20x20xf32>, vector<2x20xf32> -> vector<2x20xf32>
    %c131 = arith.constant 131 : index
    %c0_14 = arith.constant 0 : index
    %22 = vector.load %arg1[%c131, %c0_14] : memref<136x20xf32, #tpu.memory_space<vmem>>, vector<1x20xf32>
    %23 = vector.broadcast %22 : vector<1x20xf32> to vector<2x20xf32>
    %24 = arith.addf %21, %23 : vector<2x20xf32>
    %cst_15 = arith.constant 0.000000e+00 : f32
    %25 = vector.broadcast %cst_15 : f32 to vector<2x20xf32>
    %26 = arith.maximumf %24, %25 : vector<2x20xf32>
    %c104 = arith.constant 104 : index
    %c0_16 = arith.constant 0 : index
    %27 = vector.load %arg1[%c104, %c0_16] : memref<136x20xf32, #tpu.memory_space<vmem>>, vector<20x20xf32>
    %cst_17 = arith.constant dense<0.000000e+00> : vector<2x20xf32>
    %28 = tpu.matmul %26, %27, %cst_17 {dimension_numbers = #tpu.dot_dimension_numbers<[1], [0], [0], [1], [0, 0, 1, 1], [], []>} : vector<2x20xf32>, vector<20x20xf32>, vector<2x20xf32> -> vector<2x20xf32>
    %c132 = arith.constant 132 : index
    %c0_18 = arith.constant 0 : index
    %29 = vector.load %arg1[%c132, %c0_18] : memref<136x20xf32, #tpu.memory_space<vmem>>, vector<1x20xf32>
    %30 = vector.broadcast %29 : vector<1x20xf32> to vector<2x20xf32>
    %31 = arith.addf %28, %30 : vector<2x20xf32>
    %32 = vector.extract_strided_slice %31 {offsets = [0, 0], sizes = [2, 1], strides = [1, 1]} : vector<2x20xf32> to vector<2x1xf32>
    %33 = tpu.iota {dimensions = array<i32: 1>} : vector<1x8xi32>
    %34 = arith.sitofp %33 : vector<1x8xi32> to vector<1x8xf32>
    %cst_19 = arith.constant 1.000000e+00 : f32
    %35 = vector.broadcast %cst_19 : f32 to vector<1x8xf32>
    %36 = arith.addf %34, %35 : vector<1x8xf32>
    %37 = math.log %36 : vector<1x8xf32>
    %cst_20 = arith.constant 1.000000e+00 : f32
    %38 = vector.broadcast %cst_20 : f32 to vector<2x1xf32>
    %39 = arith.addf %38, %32 : vector<2x1xf32>
    %40 = tpu.reciprocal %39 {approx = true} : vector<2x1xf32> -> vector<2x1xf32>
    %41 = arith.mulf %39, %40 : vector<2x1xf32>
    %cst_21 = arith.constant 2.000000e+00 : f32
    %42 = vector.broadcast %cst_21 : f32 to vector<2x1xf32>
    %43 = arith.subf %42, %41 : vector<2x1xf32>
    %44 = arith.mulf %40, %43 : vector<2x1xf32>
    %45 = vector.broadcast %37 : vector<1x8xf32> to vector<2x8xf32>
    %46 = vector.broadcast %32 : vector<2x1xf32> to vector<2x8xf32>
    %47 = arith.subf %45, %46 : vector<2x8xf32>
    %48 = vector.broadcast %44 : vector<2x1xf32> to vector<2x8xf32>
    %49 = arith.mulf %47, %48 : vector<2x8xf32>
    %cst_22 = arith.constant 0.707106769 : f32
    %50 = vector.broadcast %cst_22 : f32 to vector<2x8xf32>
    %51 = arith.mulf %49, %50 : vector<2x8xf32>
    %cst_23 = arith.constant 0.000000e+00 : f32
    %52 = vector.broadcast %cst_23 : f32 to vector<2x8xf32>
    %53 = arith.cmpf olt, %51, %52 : vector<2x8xf32>
    %cst_24 = arith.constant -1.000000e+00 : f32
    %cst_25 = arith.constant 1.000000e+00 : f32
    %54 = vector.broadcast %cst_24 : f32 to vector<2x8xf32>
    %55 = vector.broadcast %cst_25 : f32 to vector<2x8xf32>
    %56 = arith.select %53, %54, %55 : vector<2x8xi1>, vector<2x8xf32>
    %57 = math.absf %51 : vector<2x8xf32>
    %cst_26 = arith.constant 0.327591091 : f32
    %58 = vector.broadcast %cst_26 : f32 to vector<2x8xf32>
    %59 = arith.mulf %58, %57 : vector<2x8xf32>
    %cst_27 = arith.constant 1.000000e+00 : f32
    %60 = vector.broadcast %cst_27 : f32 to vector<2x8xf32>
    %61 = arith.addf %60, %59 : vector<2x8xf32>
    %62 = tpu.reciprocal %61 {approx = true} : vector<2x8xf32> -> vector<2x8xf32>
    %63 = arith.mulf %61, %62 : vector<2x8xf32>
    %cst_28 = arith.constant 2.000000e+00 : f32
    %64 = vector.broadcast %cst_28 : f32 to vector<2x8xf32>
    %65 = arith.subf %64, %63 : vector<2x8xf32>
    %66 = arith.mulf %62, %65 : vector<2x8xf32>
    %cst_29 = arith.constant 1.06140542 : f32
    %67 = vector.broadcast %cst_29 : f32 to vector<2x8xf32>
    %68 = arith.mulf %66, %67 : vector<2x8xf32>
    %cst_30 = arith.constant -1.45315206 : f32
    %69 = vector.broadcast %cst_30 : f32 to vector<2x8xf32>
    %70 = arith.addf %69, %68 : vector<2x8xf32>
    %71 = arith.mulf %66, %70 : vector<2x8xf32>
    %cst_31 = arith.constant 1.42141378 : f32
    %72 = vector.broadcast %cst_31 : f32 to vector<2x8xf32>
    %73 = arith.addf %72, %71 : vector<2x8xf32>
    %74 = arith.mulf %66, %73 : vector<2x8xf32>
    %cst_32 = arith.constant -0.284496725 : f32
    %75 = vector.broadcast %cst_32 : f32 to vector<2x8xf32>
    %76 = arith.addf %75, %74 : vector<2x8xf32>
    %77 = arith.mulf %66, %76 : vector<2x8xf32>
    %cst_33 = arith.constant 0.254829586 : f32
    %78 = vector.broadcast %cst_33 : f32 to vector<2x8xf32>
    %79 = arith.addf %78, %77 : vector<2x8xf32>
    %80 = arith.mulf %66, %79 : vector<2x8xf32>
    %cst_34 = arith.constant 0.000000e+00 : f32
    %81 = vector.broadcast %cst_34 : f32 to vector<2x8xf32>
    %82 = arith.subf %81, %57 : vector<2x8xf32>
    %83 = arith.mulf %82, %57 : vector<2x8xf32>
    %84 = math.exp %83 : vector<2x8xf32>
    %85 = arith.mulf %80, %84 : vector<2x8xf32>
    %cst_35 = arith.constant 1.000000e+00 : f32
    %86 = vector.broadcast %cst_35 : f32 to vector<2x8xf32>
    %87 = arith.subf %86, %85 : vector<2x8xf32>
    %88 = arith.mulf %56, %87 : vector<2x8xf32>
    %cst_36 = arith.constant 1.000000e+00 : f32
    %89 = vector.broadcast %cst_36 : f32 to vector<2x8xf32>
    %90 = arith.addf %89, %88 : vector<2x8xf32>
    %cst_37 = arith.constant 5.000000e-01 : f32
    %91 = vector.broadcast %cst_37 : f32 to vector<2x8xf32>
    %92 = arith.mulf %91, %90 : vector<2x8xf32>
    %93 = vector.broadcast %32 : vector<2x1xf32> to vector<2x8xf32>
    %94 = arith.mulf %93, %92 : vector<2x8xf32>
    %95 = math.exp %94 : vector<2x8xf32>
    %cst_38 = arith.constant 1.000000e+00 : f32
    %96 = vector.broadcast %cst_38 : f32 to vector<2x8xf32>
    %97 = arith.subf %95, %96 : vector<2x8xf32>
    %c0_39 = arith.constant 0 : index
    %c0_40 = arith.constant 0 : index
    %98 = vector.load %arg2[%c0_39, %c0_40] : memref<2x8xf32, #tpu.memory_space<vmem>>, vector<2x8xf32>
    tpu.vector_store %arg2[%c0_39, %c0_40], %97 {strides = array<i32>} : memref<2x8xf32, #tpu.memory_space<vmem>>, vector<2x8xf32>,
    return
  }
}

</mosaic_0001>

<llo_original>
// kernel: cvae_forward.1
$region0: #{cvae_forward.1}
  #allocation0 [shape = 'u32[]', space=smem, size = 0x4, offset = 0x4, fixed_abs, tag = 'smem constant byte address 0x4 - core index']
  #allocation1 [shape = 'u32[144,128]{1,0:T(1,128)}', space=vmem, size = 0x12000, scoped, tag = 'internal scratch']
  %s0 = inlined_call_operand.vmem [shape: f32[2,32], index: 0, kind: input, shape index: {}]
  %s1 = inlined_call_operand.vmem [shape: f32[136,20], index: 1, kind: input, shape index: {}]
  %s2 = inlined_call_operand.hbm [shape: f32[2,8], index: 2, kind: output, shape index: {}]
  %s3 = sld [smem:[#allocation0]]
  $region18: #{cvae_forward.1} parent=0
    _
  %s5 = ssub.s32 1, %s3
  %s6 = scalar_select 0, %s5, %s3
  $region1: #{cvae_forward.1} parent=0
    #allocation2 [shape = 'u8[1024]{0}', space=vmem, size = 0x400, scoped, tag = 'output window, operand 0, single buffered']
    #allocation3 [shape = 's32[1]{0}', space=sflag, size = 0x4, scoped, tag = 'scoped memory for cvae_forward.1']
    %7 = vsyncpa [#allocation3], 0
    // Predicated region
    $region2: #{cvae_forward.1} parent=1 // pred_check
      _
    $region3: #{cvae_forward.1} parent=1 // pred_check_branch
      %9 = sbr.rel (0) target = $region5
    $region4: #{cvae_forward.1} parent=1 // pred_region
      _
    $region5: #{cvae_forward.1} parent=1 // pred_fallthru
      _
    // Predicated region
    $region6: #{cvae_forward.1} parent=1 // pred_check
      _
    $region7: #{cvae_forward.1} parent=1 // pred_check_branch
      %11 = sbr.rel (0) target = $region9
    $region8: #{cvae_forward.1} parent=1 // pred_region
      _
    $region9: #{cvae_forward.1} parent=1 // pred_fallthru
      _
    %v12 = vld [vmem:[%s0] sm:$0x3]
    %v13 = vld [vmem:[%s1] sm:$0xff]
    %v14 = vld [vmem:[%s1 + $0x8] sm:$0xff]
    %v15 = vld [vmem:[%s1 + $0x10] sm:$0xff]
    %v16 = vld [vmem:[%s1 + $0x18] sm:$0xff]
    %v17 = vld [vmem:[%s1 + $0x80] sm:$0x1]
    %v18 = vlaneseq
    %v19 = vshrl.u32 %v18, 7
    %v20 = vsub.s32 0, %v19
    %v21 = vrot.slane %v17, %v20
    %vm22 = vcmask 261120
    %v24 = vsel %vm22, %v12, 0
    %26 = vmatprep.subr.mxu0 0.0
    %27 = vmatpush1.msra.mxu0 0.0
    %28 = vmatprep.subr.mxu0 0.0
    %29 = vmatpush1.msra.mxu0 0.0
    %30 = vmatprep.subr.mxu0 0.0
    %31 = vmatpush1.msra.mxu0 0.0
    %32 = vmatprep.subr.mxu0 0.0
    %33 = vmatpush1.msra.mxu0 0.0
    %34 = vmatprep.subr.mxu0 0.0
    %35 = vmatpush1.msra.mxu0 0.0
    %36 = vmatprep.subr.mxu0 0.0
    %37 = vmatpush1.msra.mxu0 0.0
    %38 = vmatprep.subr.mxu0 0.0
    %39 = vmatpush1.msra.mxu0 0.0
    %40 = vmatprep.subr.mxu0 0.0
    %41 = vmatpush1.msra.mxu0 0.0
    %42 = vmatprep.subr.mxu0 0.0
    %43 = vmatpush1.msra.mxu0 0.0
    %44 = vmatprep.subr.mxu0 0.0
    %45 = vmatpush1.msra.mxu0 0.0
    %46 = vmatprep.subr.mxu0 0.0
    %47 = vmatpush1.msra.mxu0 0.0
    %48 = vmatprep.subr.mxu0 0.0
    %49 = vmatpush1.msra.mxu0 0.0
    %50 = vmatprep.subr.mxu0 0.0
    %51 = vmatpush1.msra.mxu0 %v16
    %52 = vmatprep.subr.mxu0 0.0
    %53 = vmatpush1.msra.mxu0 %v15
    %54 = vmatprep.subr.mxu0 0.0
    %55 = vmatpush1.msra.mxu0 %v14
    %56 = vmatprep.subr.mxu0 0.0
    %57 = vmatpush1.msra.mxu0 %v13
    %58 = vmatprep.subr.mxu0 0.0
    %59 = vmatpush2.msra.mxu0 0.0
    %60 = vmatprep.subr.mxu0 0.0
    %61 = vmatpush2.msra.mxu0 0.0
    %62 = vmatprep.subr.mxu0 0.0
    %63 = vmatpush2.msra.mxu0 0.0
    %64 = vmatprep.subr.mxu0 0.0
    %65 = vmatpush2.msra.mxu0 0.0
    %66 = vmatprep.subr.mxu0 0.0
    %67 = vmatpush2.msra.mxu0 0.0
    %68 = vmatprep.subr.mxu0 0.0
    %69 = vmatpush2.msra.mxu0 0.0
    %70 = vmatprep.subr.mxu0 0.0
    %71 = vmatpush2.msra.mxu0 0.0
    %72 = vmatprep.subr.mxu0 0.0
    %73 = vmatpush2.msra.mxu0 0.0
    %74 = vmatprep.subr.mxu0 0.0
    %75 = vmatpush2.msra.mxu0 0.0
    %76 = vmatprep.subr.mxu0 0.0
    %77 = vmatpush2.msra.mxu0 0.0
    %78 = vmatprep.subr.mxu0 0.0
    %79 = vmatpush2.msra.mxu0 0.0
    %80 = vmatprep.subr.mxu0 0.0
    %81 = vmatpush2.msra.mxu0 0.0
    %82 = vmatprep.subr.mxu0 0.0
    %83 = vmatpush2.msra.mxu0 0.0
    %84 = vmatprep.subr.mxu0 0.0
    %85 = vmatpush2.msra.mxu0 0.0
    %86 = vmatprep.subr.mxu0 0.0
    %87 = vmatpush2.msra.mxu0 0.0
    %88 = vmatprep.subr.mxu0 0.0
    %89 = vmatpush2.msra.mxu0 0.0
    %90 = vmatprep.mubr.f32.mxu0 0.0
    %91 = vmatmul.mubr.f32.gmra.mxu0 %v24
    %v92 = vpop.f32.mrf.mxu0
    %v93 = vadd.f32 %v21, %v92
    %v94 = vpop.f32.mrf.mxu0
    %95 = vdwg.mxu0
    %v96 = vmax.f32 %v93, 0.0
    %v97 = vld [vmem:[%s1 + $0x20] sm:$0xff]
    %v98 = vld [vmem:[%s1 + $0x28] sm:$0xff]
    %v99 = vld [vmem:[%s1 + $0x30] sm:$0xf]
    %v100 = vld [vmem:[%s1 + $0x81] sm:$0x1]
    %v101 = vlaneseq
    %v102 = vshrl.u32 %v101, 7
    %v103 = vsub.s32 0, %v102
    %v104 = vrot.slane %v100, %v103
    %vm105 = vcmask 162816
    %v107 = vsel %vm105, %v96, 0
    %vm109 = vcmask 1043456
    %v111 = vsel %vm109, %v99, 0
    %113 = vmatprep.subr.mxu0 0.0
    %114 = vmatpush1.msra.mxu0 0.0
    %115 = vmatprep.subr.mxu0 0.0
    %116 = vmatpush1.msra.mxu0 0.0
    %117 = vmatprep.subr.mxu0 0.0
    %118 = vmatpush1.msra.mxu0 0.0
    %119 = vmatprep.subr.mxu0 0.0
    %120 = vmatpush1.msra.mxu0 0.0
    %121 = vmatprep.subr.mxu0 0.0
    %122 = vmatpush1.msra.mxu0 0.0
    %123 = vmatprep.subr.mxu0 0.0
    %124 = vmatpush1.msra.mxu0 0.0
    %125 = vmatprep.subr.mxu0 0.0
    %126 = vmatpush1.msra.mxu0 0.0
    %127 = vmatprep.subr.mxu0 0.0
    %128 = vmatpush1.msra.mxu0 0.0
    %129 = vmatprep.subr.mxu0 0.0
    %130 = vmatpush1.msra.mxu0 0.0
    %131 = vmatprep.subr.mxu0 0.0
    %132 = vmatpush1.msra.mxu0 0.0
    %133 = vmatprep.subr.mxu0 0.0
    %134 = vmatpush1.msra.mxu0 0.0
    %135 = vmatprep.subr.mxu0 0.0
    %136 = vmatpush1.msra.mxu0 0.0
    %137 = vmatprep.subr.mxu0 0.0
    %138 = vmatpush1.msra.mxu0 0.0
    %139 = vmatprep.subr.mxu0 0.0
    %140 = vmatpush1.msra.mxu0 %v111
    %141 = vmatprep.subr.mxu0 0.0
    %142 = vmatpush1.msra.mxu0 %v98
    %143 = vmatprep.subr.mxu0 0.0
    %144 = vmatpush1.msra.mxu0 %v97
    %145 = vmatprep.subr.mxu0 0.0
    %146 = vmatpush2.msra.mxu0 0.0
    %147 = vmatprep.subr.mxu0 0.0
    %148 = vmatpush2.msra.mxu0 0.0
    %149 = vmatprep.subr.mxu0 0.0
    %150 = vmatpush2.msra.mxu0 0.0
    %151 = vmatprep.subr.mxu0 0.0
    %152 = vmatpush2.msra.mxu0 0.0
    %153 = vmatprep.subr.mxu0 0.0
    %154 = vmatpush2.msra.mxu0 0.0
    %155 = vmatprep.subr.mxu0 0.0
    %156 = vmatpush2.msra.mxu0 0.0
    %157 = vmatprep.subr.mxu0 0.0
    %158 = vmatpush2.msra.mxu0 0.0
    %159 = vmatprep.subr.mxu0 0.0
    %160 = vmatpush2.msra.mxu0 0.0
    %161 = vmatprep.subr.mxu0 0.0
    %162 = vmatpush2.msra.mxu0 0.0
    %163 = vmatprep.subr.mxu0 0.0
    %164 = vmatpush2.msra.mxu0 0.0
    %165 = vmatprep.subr.mxu0 0.0
    %166 = vmatpush2.msra.mxu0 0.0
    %167 = vmatprep.subr.mxu0 0.0
    %168 = vmatpush2.msra.mxu0 0.0
    %169 = vmatprep.subr.mxu0 0.0
    %170 = vmatpush2.msra.mxu0 0.0
    %171 = vmatprep.subr.mxu0 0.0
    %172 = vmatpush2.msra.mxu0 0.0
    %173 = vmatprep.subr.mxu0 0.0
    %174 = vmatpush2.msra.mxu0 0.0
    %175 = vmatprep.subr.mxu0 0.0
    %176 = vmatpush2.msra.mxu0 0.0
    %177 = vmatprep.mubr.f32.mxu0 0.0
    %178 = vmatmul.mubr.f32.gmra.mxu0 %v107
    %v179 = vpop.f32.mrf.mxu0
    %v180 = vadd.f32 %v104, %v179
    %v181 = vpop.f32.mrf.mxu0
    %182 = vdwg.mxu0
    %v183 = vld [vmem:[%s1 + $0x38] sm:$0xff]
    %v184 = vld [vmem:[%s1 + $0x40] sm:$0xff]
    %v185 = vld [vmem:[%s1 + $0x48] sm:$0xf]
    %v186 = vld [vmem:[%s1 + $0x82] sm:$0x1]
    %v187 = vlaneseq
    %v188 = vshrl.u32 %v187, 7
    %v189 = vsub.s32 0, %v188
    %v190 = vrot.slane %v186, %v189
    %v192 = vsel %vm105, %v180, 0
    %v195 = vsel %vm109, %v185, 0
    %197 = vmatprep.subr.mxu0 0.0
    %198 = vmatpush1.msra.mxu0 0.0
    %199 = vmatprep.subr.mxu0 0.0
    %200 = vmatpush1.msra.mxu0 0.0
    %201 = vmatprep.subr.mxu0 0.0
    %202 = vmatpush1.msra.mxu0 0.0
    %203 = vmatprep.subr.mxu0 0.0
    %204 = vmatpush1.msra.mxu0 0.0
    %205 = vmatprep.subr.mxu0 0.0
    %206 = vmatpush1.msra.mxu0 0.0
    %207 = vmatprep.subr.mxu0 0.0
    %208 = vmatpush1.msra.mxu0 0.0
    %209 = vmatprep.subr.mxu0 0.0
    %210 = vmatpush1.msra.mxu0 0.0
    %211 = vmatprep.subr.mxu0 0.0
    %212 = vmatpush1.msra.mxu0 0.0
    %213 = vmatprep.subr.mxu0 0.0
    %214 = vmatpush1.msra.mxu0 0.0
    %215 = vmatprep.subr.mxu0 0.0
    %216 = vmatpush1.msra.mxu0 0.0
    %217 = vmatprep.subr.mxu0 0.0
    %218 = vmatpush1.msra.mxu0 0.0
    %219 = vmatprep.subr.mxu0 0.0
    %220 = vmatpush1.msra.mxu0 0.0
    %221 = vmatprep.subr.mxu0 0.0
    %222 = vmatpush1.msra.mxu0 0.0
    %223 = vmatprep.subr.mxu0 0.0
    %224 = vmatpush1.msra.mxu0 %v195
    %225 = vmatprep.subr.mxu0 0.0
    %226 = vmatpush1.msra.mxu0 %v184
    %227 = vmatprep.subr.mxu0 0.0
    %228 = vmatpush1.msra.mxu0 %v183
    %229 = vmatprep.subr.mxu0 0.0
    %230 = vmatpush2.msra.mxu0 0.0
    %231 = vmatprep.subr.mxu0 0.0
    %232 = vmatpush2.msra.mxu0 0.0
    %233 = vmatprep.subr.mxu0 0.0
    %234 = vmatpush2.msra.mxu0 0.0
    %235 = vmatprep.subr.mxu0 0.0
    %236 = vmatpush2.msra.mxu0 0.0
    %237 = vmatprep.subr.mxu0 0.0
    %238 = vmatpush2.msra.mxu0 0.0
    %239 = vmatprep.subr.mxu0 0.0
    %240 = vmatpush2.msra.mxu0 0.0
    %241 = vmatprep.subr.mxu0 0.0
    %242 = vmatpush2.msra.mxu0 0.0
    %243 = vmatprep.subr.mxu0 0.0
    %244 = vmatpush2.msra.mxu0 0.0
    %245 = vmatprep.subr.mxu0 0.0
    %246 = vmatpush2.msra.mxu0 0.0
    %247 = vmatprep.subr.mxu0 0.0
    %248 = vmatpush2.msra.mxu0 0.0
    %249 = vmatprep.subr.mxu0 0.0
    %250 = vmatpush2.msra.mxu0 0.0
    %251 = vmatprep.subr.mxu0 0.0
    %252 = vmatpush2.msra.mxu0 0.0
    %253 = vmatprep.subr.mxu0 0.0
    %254 = vmatpush2.msra.mxu0 0.0
    %255 = vmatprep.subr.mxu0 0.0
    %256 = vmatpush2.msra.mxu0 0.0
    %257 = vmatprep.subr.mxu0 0.0
    %258 = vmatpush2.msra.mxu0 0.0
    %259 = vmatprep.subr.mxu0 0.0
    %260 = vmatpush2.msra.mxu0 0.0
    %261 = vmatprep.mubr.f32.mxu0 0.0
    %262 = vmatmul.mubr.f32.gmra.mxu0 %v192
    %v263 = vpop.f32.mrf.mxu0
    %v264 = vadd.f32 %v190, %v263
    %v265 = vpop.f32.mrf.mxu0
    %266 = vdwg.mxu0
    %v267 = vmax.f32 %v264, 0.0
    %v268 = vld [vmem:[%s1 + $0x50] sm:$0xff]
    %v269 = vld [vmem:[%s1 + $0x58] sm:$0xff]
    %v270 = vld [vmem:[%s1 + $0x60] sm:$0xf]
    %v271 = vld [vmem:[%s1 + $0x83] sm:$0x1]
    %v272 = vlaneseq
    %v273 = vshrl.u32 %v272, 7
    %v274 = vsub.s32 0, %v273
    %v275 = vrot.slane %v271, %v274
    %v277 = vsel %vm105, %v267, 0
    %v280 = vsel %vm109, %v270, 0
    %282 = vmatprep.subr.mxu0 0.0
    %283 = vmatpush1.msra.mxu0 0.0
    %284 = vmatprep.subr.mxu0 0.0
    %285 = vmatpush1.msra.mxu0 0.0
    %286 = vmatprep.subr.mxu0 0.0
    %287 = vmatpush1.msra.mxu0 0.0
    %288 = vmatprep.subr.mxu0 0.0
    %289 = vmatpush1.msra.mxu0 0.0
    %290 = vmatprep.subr.mxu0 0.0
    %291 = vmatpush1.msra.mxu0 0.0
    %292 = vmatprep.subr.mxu0 0.0
    %293 = vmatpush1.msra.mxu0 0.0
    %294 = vmatprep.subr.mxu0 0.0
    %295 = vmatpush1.msra.mxu0 0.0
    %296 = vmatprep.subr.mxu0 0.0
    %297 = vmatpush1.msra.mxu0 0.0
    %298 = vmatprep.subr.mxu0 0.0
    %299 = vmatpush1.msra.mxu0 0.0
    %300 = vmatprep.subr.mxu0 0.0
    %301 = vmatpush1.msra.mxu0 0.0
    %302 = vmatprep.subr.mxu0 0.0
    %303 = vmatpush1.msra.mxu0 0.0
    %304 = vmatprep.subr.mxu0 0.0
    %305 = vmatpush1.msra.mxu0 0.0
    %306 = vmatprep.subr.mxu0 0.0
    %307 = vmatpush1.msra.mxu0 0.0
    %308 = vmatprep.subr.mxu0 0.0
    %309 = vmatpush1.msra.mxu0 %v280
    %310 = vmatprep.subr.mxu0 0.0
    %311 = vmatpush1.msra.mxu0 %v269
    %312 = vmatprep.subr.mxu0 0.0
    %313 = vmatpush1.msra.mxu0 %v268
    %314 = vmatprep.subr.mxu0 0.0
    %315 = vmatpush2.msra.mxu0 0.0
    %316 = vmatprep.subr.mxu0 0.0
    %317 = vmatpush2.msra.mxu0 0.0
    %318 = vmatprep.subr.mxu0 0.0
    %319 = vmatpush2.msra.mxu0 0.0
    %320 = vmatprep.subr.mxu0 0.0
    %321 = vmatpush2.msra.mxu0 0.0
    %322 = vmatprep.subr.mxu0 0.0
    %323 = vmatpush2.msra.mxu0 0.0
    %324 = vmatprep.subr.mxu0 0.0
    %325 = vmatpush2.msra.mxu0 0.0
    %326 = vmatprep.subr.mxu0 0.0
    %327 = vmatpush2.msra.mxu0 0.0
    %328 = vmatprep.subr.mxu0 0.0
    %329 = vmatpush2.msra.mxu0 0.0
    %330 = vmatprep.subr.mxu0 0.0
    %331 = vmatpush2.msra.mxu0 0.0
    %332 = vmatprep.subr.mxu0 0.0
    %333 = vmatpush2.msra.mxu0 0.0
    %334 = vmatprep.subr.mxu0 0.0
    %335 = vmatpush2.msra.mxu0 0.0
    %336 = vmatprep.subr.mxu0 0.0
    %337 = vmatpush2.msra.mxu0 0.0
    %338 = vmatprep.subr.mxu0 0.0
    %339 = vmatpush2.msra.mxu0 0.0
    %340 = vmatprep.subr.mxu0 0.0
    %341 = vmatpush2.msra.mxu0 0.0
    %342 = vmatprep.subr.mxu0 0.0
    %343 = vmatpush2.msra.mxu0 0.0
    %344 = vmatprep.subr.mxu0 0.0
    %345 = vmatpush2.msra.mxu0 0.0
    %346 = vmatprep.mubr.f32.mxu0 0.0
    %347 = vmatmul.mubr.f32.gmra.mxu0 %v277
    %v348 = vpop.f32.mrf.mxu0
    %v349 = vadd.f32 %v275, %v348
    %v350 = vpop.f32.mrf.mxu0
    %351 = vdwg.mxu0
    %v352 = vmax.f32 %v349, 0.0
    %v353 = vld [vmem:[%s1 + $0x68] sm:$0xff]
    %v354 = vld [vmem:[%s1 + $0x70] sm:$0xff]
    %v355 = vld [vmem:[%s1 + $0x78] sm:$0xf]
    %v356 = vld [vmem:[%s1 + $0x84] sm:$0x1]
    %v357 = vlaneseq
    %v358 = vshrl.u32 %v357, 7
    %v359 = vsub.s32 0, %v358
    %v360 = vrot.slane %v356, %v359
    %v362 = vsel %vm105, %v352, 0
    %v365 = vsel %vm109, %v355, 0
    %367 = vmatprep.subr.mxu0 0.0
    %368 = vmatpush1.msra.mxu0 0.0
    %369 = vmatprep.subr.mxu0 0.0
    %370 = vmatpush1.msra.mxu0 0.0
    %371 = vmatprep.subr.mxu0 0.0
    %372 = vmatpush1.msra.mxu0 0.0
    %373 = vmatprep.subr.mxu0 0.0
    %374 = vmatpush1.msra.mxu0 0.0
    %375 = vmatprep.subr.mxu0 0.0
    %376 = vmatpush1.msra.mxu0 0.0
    %377 = vmatprep.subr.mxu0 0.0
    %378 = vmatpush1.msra.mxu0 0.0
    %379 = vmatprep.subr.mxu0 0.0
    %380 = vmatpush1.msra.mxu0 0.0
    %381 = vmatprep.subr.mxu0 0.0
    %382 = vmatpush1.msra.mxu0 0.0
    %383 = vmatprep.subr.mxu0 0.0
    %384 = vmatpush1.msra.mxu0 0.0
    %385 = vmatprep.subr.mxu0 0.0
    %386 = vmatpush1.msra.mxu0 0.0
    %387 = vmatprep.subr.mxu0 0.0
    %388 = vmatpush1.msra.mxu0 0.0
    %389 = vmatprep.subr.mxu0 0.0
    %390 = vmatpush1.msra.mxu0 0.0
    %391 = vmatprep.subr.mxu0 0.0
    %392 = vmatpush1.msra.mxu0 0.0
    %393 = vmatprep.subr.mxu0 0.0
    %394 = vmatpush1.msra.mxu0 %v365
    %395 = vmatprep.subr.mxu0 0.0
    %396 = vmatpush1.msra.mxu0 %v354
    %397 = vmatprep.subr.mxu0 0.0
    %398 = vmatpush1.msra.mxu0 %v353
    %399 = vmatprep.subr.mxu0 0.0
    %400 = vmatpush2.msra.mxu0 0.0
    %401 = vmatprep.subr.mxu0 0.0
    %402 = vmatpush2.msra.mxu0 0.0
    %403 = vmatprep.subr.mxu0 0.0
    %404 = vmatpush2.msra.mxu0 0.0
    %405 = vmatprep.subr.mxu0 0.0
    %406 = vmatpush2.msra.mxu0 0.0
    %407 = vmatprep.subr.mxu0 0.0
    %408 = vmatpush2.msra.mxu0 0.0
    %409 = vmatprep.subr.mxu0 0.0
    %410 = vmatpush2.msra.mxu0 0.0
    %411 = vmatprep.subr.mxu0 0.0
    %412 = vmatpush2.msra.mxu0 0.0
    %413 = vmatprep.subr.mxu0 0.0
    %414 = vmatpush2.msra.mxu0 0.0
    %415 = vmatprep.subr.mxu0 0.0
    %416 = vmatpush2.msra.mxu0 0.0
    %417 = vmatprep.subr.mxu0 0.0
    %418 = vmatpush2.msra.mxu0 0.0
    %419 = vmatprep.subr.mxu0 0.0
    %420 = vmatpush2.msra.mxu0 0.0
    %421 = vmatprep.subr.mxu0 0.0
    %422 = vmatpush2.msra.mxu0 0.0
    %423 = vmatprep.subr.mxu0 0.0
    %424 = vmatpush2.msra.mxu0 0.0
    %425 = vmatprep.subr.mxu0 0.0
    %426 = vmatpush2.msra.mxu0 0.0
    %427 = vmatprep.subr.mxu0 0.0
    %428 = vmatpush2.msra.mxu0 0.0
    %429 = vmatprep.subr.mxu0 0.0
    %430 = vmatpush2.msra.mxu0 0.0
    %431 = vmatprep.mubr.f32.mxu0 0.0
    %432 = vmatmul.mubr.f32.gmra.mxu0 %v362
    %v433 = vpop.f32.mrf.mxu0
    %v434 = vadd.f32 %v360, %v433
    %v435 = vpop.f32.mrf.mxu0
    %436 = vdwg.mxu0
    %v437 = vlaneseq
    %v438 = vand.u32 %v437, 127
    %v439 = vcvt.s32.f32 %v438
    %v440 = vadd.f32 %v439, 1.0
    %v441 = vlog2.pop %v440
    %v442 = vmul.f32 %v441, 0.6931472
    %v443 = vadd.f32 %v434, 1.0
    %v444 = vrcp.pop %v443
    %v445 = vmul.f32 %v443, %v444
    %v446 = vsub.f32 2.0, %v445
    %v447 = vmul.f32 %v444, %v446
    %449 = vset.pattern.permute.xlu0 0
    %450 = vperm.xlu0 %449, %v434
    %v451 = vpop.permute.xlu0 %450
    %v453 = vsub.f32 %v442, %v451
    %455 = vset.pattern.permute.xlu0 0
    %456 = vperm.xlu0 %455, %v447
    %v457 = vpop.permute.xlu0 %456
    %v459 = vmul.f32 %v453, %v457
    %v460 = vmul.f32 %v459, 0.70710677
    %vm461 = vcmp.lt.f32.partialorder %v460, 0.0
    %v462 = vsel %vm461, -1.0, 1.0
    %v463 = vand.u32 2147483647, %v460
    %v464 = vmul.f32 %v463, 0.3275911
    %v465 = vadd.f32 %v464, 1.0
    %v466 = vrcp.pop %v465
    %v467 = vmul.f32 %v465, %v466
    %v468 = vsub.f32 2.0, %v467
    %v469 = vmul.f32 %v466, %v468
    %v470 = vmul.f32 %v469, 1.0614054
    %v471 = vadd.f32 %v470, -1.4531521
    %v472 = vmul.f32 %v469, %v471
    %v473 = vadd.f32 %v472, 1.4214138
    %v474 = vmul.f32 %v469, %v473
    %v475 = vadd.f32 %v474, -0.28449672
    %v476 = vmul.f32 %v469, %v475
    %v477 = vadd.f32 %v476, 0.2548296
    %v478 = vmul.f32 %v469, %v477
    %v479 = vsub.f32 0.0, %v463
    %v480 = vmul.f32 %v479, %v463
    %v481 = vmul.f32 %v480, 1.442695
    %v482 = vpow.pop %v481
    %v483 = vmul.f32 %v478, %v482
    %v484 = vsub.f32 1.0, %v483
    %v485 = vmul.f32 %v462, %v484
    %v486 = vadd.f32 %v485, 1.0
    %v487 = vmul.f32 %v486, 0.5
    %v488 = vmul.f32 %v451, %v487
    %v489 = vmul.f32 %v488, 1.442695
    %v490 = vpow.pop %v489
    %v491 = vsub.f32 %v490, 1.0
    %vm492 = vcmask 58368
    %493 = vst.msk [vmem:[#allocation2] sm:$0x3] %vm492, %v491
    // Predicated region
    $region10: #{cvae_forward.1} parent=1 // pred_check
      _
    $region11: #{cvae_forward.1} parent=1 // pred_check_branch
      %495 = sbr.rel (0) target = $region13
    $region12: #{cvae_forward.1} parent=1 // pred_region
      %s497 = ssub.s32 32, 32
      %498 = vsyncadd [#allocation3], %s497
      %s500 = sshll.u32 [#allocation2], 4
      %s501 = int_to_ptr.vmem [resolvable:$true] %s500
      %503 = dma.vmem_to_hbm [thread:$0]  %s501, 32, %s2, [#allocation3]
    $region13: #{cvae_forward.1} parent=1 // pred_fallthru
      _
    // Predicated region
    $region14: #{cvae_forward.1} parent=1 // pred_check
      _
    $region15: #{cvae_forward.1} parent=1 // pred_check_branch
      %505 = sbr.rel (0) target = $region17
    $region16: #{cvae_forward.1} parent=1 // pred_region
      %506 = dma.done [#allocation3], 32
    $region17: #{cvae_forward.1} parent=1 // pred_fallthru
      _
    %507 = vsyncpa [#allocation3], 1

</llo_original>
